<compile_context>
chip_gen: v7x
topology: tpu7x:2x2x1
jax: 0.10.0
libtpu: 0.0.40
codegen_flags: <defaults>
</compile_context>

<pallas_src>
import jax
import jax.numpy as jnp
import numpy as np
from jax.experimental import pallas as pl
from jax.experimental.pallas import tpu as pltpu


def _round_up(x, m):
    return (x + m - 1) // m * m


def _cdiv(a, b):
    return (a + b - 1) // b


def _nll_partial_kernel(dec_ref, y_ref, out_ref):
    """Accumulate sum(-y * log_softmax(dec)) for this row tile into out_ref."""
    i = pl.program_id(1)

    @pl.when(i == 0)
    def _init():
        out_ref[...] = jnp.zeros_like(out_ref)

    d = dec_ref[...].astype(jnp.float32)          # (RT, Vp), upcast in-kernel
    y = y_ref[...].astype(jnp.float32)            # (RT, Vp)

    # Numerically stable log-sum-exp over the vocab (lane) axis.
    m = jnp.max(d, axis=-1, keepdims=True)                            # (RT, 1)
    lse = jnp.log(jnp.sum(jnp.exp(d - m), axis=-1, keepdims=True)) + m
    neg_ll = y * (lse - d)                        # == -y * log_softmax(d)

    rt, vp = neg_ll.shape
    # Fold every group of 8 rows into one (8, Vp) slab: this is a pure
    # vreg-wise VPU add tree (the reshape splits the sublane axis at vreg
    # boundaries, so no relayout); the single cross-lane/cross-sublane reduce
    # is deferred to the wrapper.
    partial = jnp.sum(neg_ll.reshape(rt // 8, 8, vp), axis=0)         # (8, Vp)
    out_ref[0] = out_ref[0] + partial


def seqvae_loss(decoder_output, mu_q, logvar_q, y_true_s, anneal, batch_size,
                max_row_tile=512, num_splits=2):
    B, S, V = decoder_output.shape
    rows = B * S

    # --- tiny terms: plain JAX, kept out of the pipelined grid --------------
    lv = logvar_q.astype(jnp.float32)
    mu = mu_q.astype(jnp.float32)
    kld = jnp.mean(jnp.sum(0.5 * (-lv + jnp.exp(lv) + mu * mu - 1.0), axis=-1))
    num_ones = jnp.sum(y_true_s[0, 0].astype(jnp.float32))

    # --- big streaming NLL reduction in Pallas (native dtype, no f32 copy) --
    dec2 = decoder_output.reshape(rows, V)
    y2 = y_true_s.reshape(rows, V)

    v_pad = _round_up(V, 128)
    # Size the row tile so both double-buffered input streams stay within a
    # conservative VMEM budget (safe on v5e's 16 MiB default scoped VMEM and
    # v7x's 64 MiB physical VMEM alike).
    bytes_per_row = v_pad * (dec2.dtype.itemsize + y2.dtype.itemsize)
    vmem_budget = 24 * 1024 * 1024
    cap = max(8, (vmem_budget // (2 * bytes_per_row)) // 8 * 8)
    row_tile = max(8, min(max_row_tile, cap,
                          _round_up(_cdiv(rows, num_splits), 8)))
    row_tile = (row_tile // 8) * 8
    rows_pad = _round_up(rows, num_splits * row_tile)
    inner = rows_pad // (num_splits * row_tile)

    if v_pad != V:
        # Vocab padding: very negative logits (exp -> 0, lse unchanged) and
        # zero targets, so padded columns contribute exactly 0.
        if jnp.issubdtype(dec2.dtype, jnp.floating):
            neg = float(jnp.finfo(dec2.dtype).min)
        else:
            neg = -1e9
        dec2 = jnp.pad(dec2, ((0, 0), (0, v_pad - V)), constant_values=neg)
        y2 = jnp.pad(y2, ((0, 0), (0, v_pad - V)))
    if rows_pad != rows:
        # Padded rows have y == 0, so they contribute 0 regardless of logits.
        dec2 = jnp.pad(dec2, ((0, rows_pad - rows), (0, 0)))
        y2 = jnp.pad(y2, ((0, rows_pad - rows), (0, 0)))

    partials = pl.pallas_call(
        _nll_partial_kernel,
        out_shape=jax.ShapeDtypeStruct((num_splits, 8, v_pad), jnp.float32),
        grid_spec=pltpu.PrefetchScalarGridSpec(
            num_scalar_prefetch=0,
            grid=(num_splits, inner),
            in_specs=[
                pl.BlockSpec((row_tile, v_pad), lambda c, i: (c * inner + i, 0)),
                pl.BlockSpec((row_tile, v_pad), lambda c, i: (c * inner + i, 0)),
            ],
            out_specs=pl.BlockSpec((1, 8, v_pad), lambda c, i: (c, 0, 0)),
        ),
        compiler_params=pltpu.CompilerParams(
            dimension_semantics=("parallel", "arbitrary"),
            vmem_limit_bytes=32 * 1024 * 1024,
        ),
    )(dec2, y2)

    nll_sum = jnp.sum(partials)        # single final cross-lane reduce
    likelihood = nll_sum / (jnp.float32(batch_size) * num_ones)
    return anneal * kld + likelihood


def seqvae_loss_ref(decoder_output, mu_q, logvar_q, y_true_s, anneal, batch_size):
    """Pure-JAX reference mirroring the PyTorch forward."""
    kld = jnp.mean(jnp.sum(
        0.5 * (-logvar_q + jnp.exp(logvar_q) + mu_q ** 2 - 1.0), axis=-1))
    B, S, V = decoder_output.shape
    log_sm = jax.nn.log_softmax(decoder_output, axis=-1)
    num_ones = jnp.sum(y_true_s[0, 0])
    likelihood = jnp.sum(
        -1.0 * y_true_s.reshape(B * S, -1) * log_sm.reshape(B * S, -1)
    ) / (float(batch_size) * num_ones)
    return anneal * kld + likelihood


if __name__ == "__main__":
    key = jax.random.PRNGKey(0)

    # --- case 1: aligned shapes ---------------------------------------------
    B, S, V, L = 2, 8, 256, 32
    batch_size = B
    anneal = 0.5
    k1, k2, k3, k4 = jax.random.split(key, 4)
    decoder_output = jax.random.normal(k1, (B, S, V), dtype=jnp.float32)
    mu_q = jax.random.normal(k2, (B, L), dtype=jnp.float32)
    logvar_q = 0.1 * jax.random.normal(k3, (B, L), dtype=jnp.float32)
    y_true_s = (jax.random.uniform(k4, (B, S, V)) < 0.05).astype(jnp.float32)
    y_true_s = y_true_s.at[0, 0, 0].set(1.0)   # guarantee num_ones > 0

    loss = seqvae_loss(decoder_output, mu_q, logvar_q, y_true_s, anneal,
                       batch_size)
    loss = jax.block_until_ready(loss)
    ref = seqvae_loss_ref(decoder_output, mu_q, logvar_q, y_true_s, anneal,
                          batch_size)
    np.testing.assert_allclose(np.asarray(loss), np.asarray(ref),
                               rtol=1e-4, atol=1e-5)

    # --- case 2: ragged shapes (exercises row/vocab zero-padding path) ------
    B2, S2, V2, L2 = 2, 5, 200, 32
    k5, k6, k7, k8 = jax.random.split(jax.random.PRNGKey(1), 4)
    dec2 = jax.random.normal(k5, (B2, S2, V2), dtype=jnp.float32)
    mu2 = jax.random.normal(k6, (B2, L2), dtype=jnp.float32)
    lv2 = 0.1 * jax.random.normal(k7, (B2, L2), dtype=jnp.float32)
    y2 = (jax.random.uniform(k8, (B2, S2, V2)) < 0.05).astype(jnp.float32)
    y2 = y2.at[0, 0, 0].set(1.0)

    loss2 = jax.block_until_ready(
        seqvae_loss(dec2, mu2, lv2, y2, anneal, B2))
    ref2 = seqvae_loss_ref(dec2, mu2, lv2, y2, anneal, B2)
    np.testing.assert_allclose(np.asarray(loss2), np.asarray(ref2),
                               rtol=1e-4, atol=1e-5)

    print("KERNEL_OK")
</pallas_src>

<mosaic_0001>
module attributes {stable_mosaic.version = 11 : i64} {
  func.func @_nll_partial_kernel(%arg0: i32, %arg1: i32, %arg2: memref<8x256xf32, #tpu.memory_space<vmem>>, %arg3: memref<8x256xf32, #tpu.memory_space<vmem>>, %arg4: memref<1x8x256xf32, #tpu.memory_space<vmem>>) attributes {dimension_semantics = [#tpu.dimension_semantics<parallel>, #tpu.dimension_semantics<arbitrary>], iteration_bounds = array<i64: 2, 1>, scalar_prefetch = 0 : i64, scratch_operands = 0 : i64, tpu.core_type = #tpu.core_type<tc>, window_params = [{transform_indices = @transform_0, window_bounds = array<i64: 8, 256>}, {transform_indices = @transform_1, window_bounds = array<i64: 8, 256>}, {transform_indices = @transform_2, window_bounds = array<i64: 1, 8, 256>}]} {
    %c0_i32 = arith.constant 0 : i32
    %0 = arith.cmpi eq, %arg1, %c0_i32 : i32
    %1 = arith.extui %0 : i1 to i32
    %c0_i32_0 = arith.constant 0 : i32
    %2 = arith.cmpi ne, %1, %c0_i32_0 : i32
    scf.if %2 {
      %cst_12 = arith.constant 0.000000e+00 : f32
      %25 = vector.broadcast %cst_12 : f32 to vector<1x8x256xf32>
      %c0_13 = arith.constant 0 : index
      %c0_14 = arith.constant 0 : index
      %c0_15 = arith.constant 0 : index
      %26 = vector.load %arg4[%c0_13, %c0_14, %c0_15] : memref<1x8x256xf32, #tpu.memory_space<vmem>>, vector<1x8x256xf32>
      tpu.vector_store %arg4[%c0_13, %c0_14, %c0_15], %25 {strides = array<i32>} : memref<1x8x256xf32, #tpu.memory_space<vmem>>, vector<1x8x256xf32>,
    } else {
    }
    %c0 = arith.constant 0 : index
    %c0_1 = arith.constant 0 : index
    %3 = vector.load %arg2[%c0, %c0_1] : memref<8x256xf32, #tpu.memory_space<vmem>>, vector<8x256xf32>
    %c0_2 = arith.constant 0 : index
    %c0_3 = arith.constant 0 : index
    %4 = vector.load %arg3[%c0_2, %c0_3] : memref<8x256xf32, #tpu.memory_space<vmem>>, vector<8x256xf32>
    %cst = arith.constant dense<0xFF800000> : vector<8xf32>
    %5 = vector.multi_reduction <maximumf>, %3, %cst [1] : vector<8x256xf32> to vector<8xf32>
    %6 = vector.shape_cast %5 : vector<8xf32> to vector<8x1xf32>
    %7 = vector.broadcast %6 : vector<8x1xf32> to vector<8x256xf32>
    %8 = arith.subf %3, %7 : vector<8x256xf32>
    %9 = math.exp %8 : vector<8x256xf32>
    %cst_4 = arith.constant dense<0.000000e+00> : vector<8xf32>
    %10 = vector.multi_reduction <add>, %9, %cst_4 [1] : vector<8x256xf32> to vector<8xf32>
    %11 = vector.shape_cast %10 : vector<8xf32> to vector<8x1xf32>
    %12 = math.log %11 : vector<8x1xf32>
    %13 = arith.addf %12, %6 : vector<8x1xf32>
    %14 = vector.broadcast %13 : vector<8x1xf32> to vector<8x256xf32>
    %15 = arith.subf %14, %3 : vector<8x256xf32>
    %16 = arith.mulf %4, %15 : vector<8x256xf32>
    %17 = vector.shape_cast %16 : vector<8x256xf32> to vector<1x8x256xf32>
    %cst_5 = arith.constant dense<0.000000e+00> : vector<8x256xf32>
    %18 = vector.multi_reduction <add>, %17, %cst_5 [0] : vector<1x8x256xf32> to vector<8x256xf32>
    %c0_6 = arith.constant 0 : index
    %c0_7 = arith.constant 0 : index
    %c0_8 = arith.constant 0 : index
    %19 = vector.load %arg4[%c0_6, %c0_7, %c0_8] : memref<1x8x256xf32, #tpu.memory_space<vmem>>, vector<1x8x256xf32>
    %20 = vector.shape_cast %19 : vector<1x8x256xf32> to vector<8x256xf32>
    %21 = arith.addf %20, %18 : vector<8x256xf32>
    %c0_9 = arith.constant 0 : index
    %c0_10 = arith.constant 0 : index
    %c0_11 = arith.constant 0 : index
    %22 = vector.load %arg4[%c0_9, %c0_10, %c0_11] : memref<1x8x256xf32, #tpu.memory_space<vmem>>, vector<1x8x256xf32>
    %23 = vector.shape_cast %22 : vector<1x8x256xf32> to vector<8x256xf32>
    %24 = vector.shape_cast %21 : vector<8x256xf32> to vector<1x8x256xf32>
    tpu.vector_store %arg4[%c0_9, %c0_10, %c0_11], %24 {strides = array<i32>} : memref<1x8x256xf32, #tpu.memory_space<vmem>>, vector<1x8x256xf32>,
    return
  }
  func.func @transform_0(%arg0: i32, %arg1: i32) -> (i32, i32) {
    %c1_i32 = arith.constant 1 : i32
    %0 = arith.muli %arg0, %c1_i32 : i32
    %1 = arith.addi %0, %arg1 : i32
    %c0_i32 = arith.constant 0 : i32
    %c0_i32_0 = arith.constant 0 : i32
    return %1, %c0_i32 : i32, i32
  }
  func.func @transform_1(%arg0: i32, %arg1: i32) -> (i32, i32) {
    %c1_i32 = arith.constant 1 : i32
    %0 = arith.muli %arg0, %c1_i32 : i32
    %1 = arith.addi %0, %arg1 : i32
    %c0_i32 = arith.constant 0 : i32
    %c0_i32_0 = arith.constant 0 : i32
    return %1, %c0_i32 : i32, i32
  }
  func.func @transform_2(%arg0: i32, %arg1: i32) -> (i32, i32, i32) {
    %c0_i32 = arith.constant 0 : i32
    %c0_i32_0 = arith.constant 0 : i32
    %c0_i32_1 = arith.constant 0 : i32
    return %arg0, %c0_i32, %c0_i32_0 : i32, i32, i32
  }
}

</mosaic_0001>

<llo_original>
// kernel: tpu_custom_call.1
$region0: #{tpu_custom_call.1}
  #allocation0 [shape = 'u32[]', space=smem, size = 0x4, offset = 0x4, fixed_abs, tag = 'smem constant byte address 0x4 - core index']
  #allocation1 [shape = 'u32[144,128]{1,0:T(1,128)}', space=vmem, size = 0x12000, scoped, tag = 'internal scratch']
  %s0 = inlined_call_operand.hbm [shape: f32[16,256], index: 0, kind: input, shape index: {}]
  %s1 = inlined_call_operand.hbm [shape: f32[16,256], index: 1, kind: input, shape index: {}]
  %s2 = inlined_call_operand.hbm [shape: f32[2,8,256], index: 2, kind: output, shape index: {}]
  %s3 = sld [smem:[#allocation0]]
  $region53: #{tpu_custom_call.1} parent=0
    _
  %s5 = ssub.s32 1, %s3
  %s6 = scalar_select 0, %s5, %s3
  $region1: #{tpu_custom_call.1} parent=0
    #allocation2 [shape = 'u8[16384]{0}', space=vmem, size = 0x4000, scoped, tag = 'input window, operand 0']
    #allocation3 [shape = 's32[2]{0}', space=sflag, size = 0x8, scoped, tag = 'scoped memory for tpu_custom_call.1']
    #allocation4 [shape = 's32[2]{0}', space=sflag, size = 0x8, scoped, tag = 'scoped memory for tpu_custom_call.1']
    #allocation5 [shape = 'u8[16384]{0}', space=vmem, size = 0x4000, scoped, tag = 'input window, operand 1']
    #allocation6 [shape = 's32[2]{0}', space=sflag, size = 0x8, scoped, tag = 'scoped memory for tpu_custom_call.1']
    #allocation7 [shape = 'u8[16384]{0}', space=vmem, size = 0x4000, scoped, tag = 'output window, operand 0']
    %7 = vsyncpa [#allocation3], 0
    %s8 = scalar_lea.sflag [#allocation3], 1
    %9 = vsyncpa %s8, 0
    %10 = vsyncpa [#allocation6], 0
    %s11 = scalar_lea.sflag [#allocation6], 1
    %12 = vsyncpa %s11, 0
    %13 = vsyncpa [#allocation4], 0
    %s14 = scalar_lea.sflag [#allocation4], 1
    %15 = vsyncpa %s14, 0
    loop: start=0, step=1, limit=4
    $region2: #{tpu_custom_call.1} parent=1 // loop_pre_header
      _
    $region3: #{tpu_custom_call.1} parent=1 // loop_header
      %s17 = sphi 0, %s21
      %p18 = scmp.ge.s32.totalorder %s17, 4
      %s24 = sphi 0, %s36
      %s25 = sphi 0, %s32
      %s26 = sphi 0, %s24
      %s27 = sphi 0, %s25
      %s28 = sphi 0, %s26
      %s29 = sphi 0, %s27
      %s41 = sphi 0, %s43
      %s44 = sphi 0, %s41
      %s45 = sphi 0, %s44
      %s61 = sphi 0, %s45
      %s69 = sphi 0, %s71
      %s72 = sphi 0, %s69
      %s73 = sphi 0, %s72
      %s89 = sphi 0, %s73
      %s95 = sphi 0, %s97
      %s98 = sphi 0, %s95
      %s99 = sphi 0, %s98
      %s115 = sphi 0, %s99
    $region4: #{tpu_custom_call.1} parent=1 // loop_header_branch
      %20 = sbr.rel (%p18) target = $region8
    $region5: #{tpu_custom_call.1} parent=1 // loop_body
      %s22 = ssub.s32 %s17, 1
      %s23 = ssub.s32 %s17, 2
      %s30 = sadd.s32 1, %s25
      %p31 = scmp.ge.s32.totalorder %s30, 1
      %s32 = scalar_select %p31, 0, %s30
      %s33 = sadd.s32 1, %s24
      %s34 = scalar_select %p31, %s33, %s24
      %p35 = scmp.ge.s32.totalorder %s34, 2
      %s36 = scalar_select %p35, 0, %s34
      %s37 = sadd.s32 %s24, %s25
      %s38 = sadd.s32 %s36, %s32
      %s39 = ssub.s32 %s37, %s38
      %p40 = scmp.eq.s32.totalorder %s39, 0
      %s42 = sadd.s32 %s41, 1
      %s43 = scalar_select %p40, %s41, %s42
      %p46 = pneg %p40
      %p47 = scmp.eq.s32.totalorder %s17, 1
      %p48 = por %p46, %p47
      %p49 = scmp.ne.s32.totalorder %s41, %s44
      %p50 = scmp.eq.s32.totalorder %s17, 0
      %p51 = por %p49, %p50
      %p52 = scmp.ne.s32.totalorder %s41, %s44
      %p53 = scmp.eq.s32.totalorder %s22, 1
      %p54 = por %p52, %p53
      %p55 = scmp.ne.s32.totalorder %s44, %s45
      %p56 = scmp.eq.s32.totalorder %s22, 0
      %p57 = por %p55, %p56
      %p58 = scmp.ne.s32.totalorder %s44, %s45
      %p59 = scmp.eq.s32.totalorder %s23, 1
      %p60 = por %p58, %p59
      %p62 = scmp.ne.s32.totalorder %s45, %s61
      %p63 = scmp.eq.s32.totalorder %s23, 0
      %p64 = por %p62, %p63
      %s65 = sadd.s32 %s24, %s25
      %s66 = sadd.s32 %s36, %s32
      %s67 = ssub.s32 %s65, %s66
      %p68 = scmp.eq.s32.totalorder %s67, 0
      %s70 = sadd.s32 %s69, 1
      %s71 = scalar_select %p68, %s69, %s70
      %p74 = pneg %p68
      %p75 = scmp.eq.s32.totalorder %s17, 1
      %p76 = por %p74, %p75
      %p77 = scmp.ne.s32.totalorder %s69, %s72
      %p78 = scmp.eq.s32.totalorder %s17, 0
      %p79 = por %p77, %p78
      %p80 = scmp.ne.s32.totalorder %s69, %s72
      %p81 = scmp.eq.s32.totalorder %s22, 1
      %p82 = por %p80, %p81
      %p83 = scmp.ne.s32.totalorder %s72, %s73
      %p84 = scmp.eq.s32.totalorder %s22, 0
      %p85 = por %p83, %p84
      %p86 = scmp.ne.s32.totalorder %s72, %s73
      %p87 = scmp.eq.s32.totalorder %s23, 1
      %p88 = por %p86, %p87
      %p90 = scmp.ne.s32.totalorder %s73, %s89
      %p91 = scmp.eq.s32.totalorder %s23, 0
      %p92 = por %p90, %p91
      %s93 = ssub.s32 %s24, %s36
      %p94 = scmp.eq.s32.totalorder %s93, 0
      %s96 = sadd.s32 %s95, 1
      %s97 = scalar_select %p94, %s95, %s96
      %p100 = pneg %p94
      %p101 = scmp.eq.s32.totalorder %s17, 1
      %p102 = por %p100, %p101
      %p103 = scmp.ne.s32.totalorder %s95, %s98
      %p104 = scmp.eq.s32.totalorder %s17, 0
      %p105 = por %p103, %p104
      %p106 = scmp.ne.s32.totalorder %s95, %s98
      %p107 = scmp.eq.s32.totalorder %s22, 1
      %p108 = por %p106, %p107
      %p109 = scmp.ne.s32.totalorder %s98, %s99
      %p110 = scmp.eq.s32.totalorder %s22, 0
      %p111 = por %p109, %p110
      %p112 = scmp.ne.s32.totalorder %s98, %s99
      %p113 = scmp.eq.s32.totalorder %s23, 1
      %p114 = por %p112, %p113
      %p116 = scmp.ne.s32.totalorder %s99, %s115
      %p117 = scmp.eq.s32.totalorder %s23, 0
      %p118 = por %p116, %p117
      %p119 = scmp.le.s32.totalorder 1, %s17
      %p120 = scmp.lt.s32.totalorder %s17, 3
      %p121 = pnand %p119, %p120
      %p122 = pneg %p121
      // Predicated region
      $region9: #{tpu_custom_call.1} parent=5 // pred_check
        _
      $region10: #{tpu_custom_call.1} parent=5 // pred_check_branch
        %124 = sbr.rel (%p121) target = $region12
      $region11: #{tpu_custom_call.1} parent=5 // pred_region
        %s125 = ssub.s32 %s17, 1
      $region12: #{tpu_custom_call.1} parent=5 // pred_fallthru
        _
      %p126 = scmp.lt.s32.totalorder %s17, 2
      // Predicated region
      $region13: #{tpu_custom_call.1} parent=5 // pred_check
        %p127 = pneg %p126
      $region14: #{tpu_custom_call.1} parent=5 // pred_check_branch
        %129 = sbr.rel (%p127) target = $region16
      $region15: #{tpu_custom_call.1} parent=5 // pred_region
        // Predicated region
        $region17: #{tpu_custom_call.1} parent=15 // pred_check
          %p130 = pneg %p51
        $region18: #{tpu_custom_call.1} parent=15 // pred_check_branch
          %132 = sbr.rel (%p130) target = $region20
        $region19: #{tpu_custom_call.1} parent=15 // pred_region
          %s133 = sand.u32 %s41, 1
          %s134 = scalar_lea.sflag [#allocation3], %s133
          %s135 = sand.u32 %s41, 1
          %s136 = smul.addr %s135, 16
          %s137 = scalar_lea.vmem [#allocation2], %s136
          %s138 = sadd.s32 %s24, %s25
          %s140 = ssub.s32 256, 256
          %141 = vsyncadd %s134, %s140
          %s142 = smul.addr %s138, 2
          %s143 = smul.addr %s142, 128
          %s144 = scalar_lea.hbm %s0, %s143
          %s146 = sshll.u32 %s137, 4
          %s147 = int_to_ptr.vmem [resolvable:$true] %s146
          %149 = dma.hbm_to_vmem [thread:$0]  %s144, 256, %s147, %s134
        $region20: #{tpu_custom_call.1} parent=15 // pred_fallthru
          _
        // Predicated region
        $region21: #{tpu_custom_call.1} parent=15 // pred_check
          %p150 = pneg %p79
        $region22: #{tpu_custom_call.1} parent=15 // pred_check_branch
          %152 = sbr.rel (%p150) target = $region24
        $region23: #{tpu_custom_call.1} parent=15 // pred_region
          %s153 = sand.u32 %s69, 1
          %s154 = scalar_lea.sflag [#allocation6], %s153
          %s155 = sand.u32 %s69, 1
          %s156 = smul.addr %s155, 16
          %s157 = scalar_lea.vmem [#allocation5], %s156
          %s158 = sadd.s32 %s24, %s25
          %s160 = ssub.s32 256, 256
          %161 = vsyncadd %s154, %s160
          %s162 = smul.addr %s158, 2
          %s163 = smul.addr %s162, 128
          %s164 = scalar_lea.hbm %s1, %s163
          %s166 = sshll.u32 %s157, 4
          %s167 = int_to_ptr.vmem [resolvable:$true] %s166
          %169 = dma.hbm_to_vmem [thread:$0]  %s164, 256, %s167, %s154
        $region24: #{tpu_custom_call.1} parent=15 // pred_fallthru
          _
      $region16: #{tpu_custom_call.1} parent=5 // pred_fallthru
        _
      %p170 = scmp.le.s32.totalorder 1, %s17
      %p171 = scmp.lt.s32.totalorder %s17, 3
      %p172 = pnand %p170, %p171
      %p173 = pneg %p172
      // Predicated region
      $region25: #{tpu_custom_call.1} parent=5 // pred_check
        _
      $region26: #{tpu_custom_call.1} parent=5 // pred_check_branch
        %175 = sbr.rel (%p172) target = $region28
      $region27: #{tpu_custom_call.1} parent=5 // pred_region
        %s176 = ssub.s32 %s17, 1
        %s177 = sand.u32 %s44, 1
        %s178 = scalar_lea.sflag [#allocation3], %s177
        %s179 = sand.u32 %s44, 1
        %s180 = smul.addr %s179, 16
        %s181 = scalar_lea.vmem [#allocation2], %s180
        // Predicated region
        $region29: #{tpu_custom_call.1} parent=27 // pred_check
          %p182 = pneg %p57
        $region30: #{tpu_custom_call.1} parent=27 // pred_check_branch
          %184 = sbr.rel (%p182) target = $region32
        $region31: #{tpu_custom_call.1} parent=27 // pred_region
          %185 = dma.done %s178, 256
        $region32: #{tpu_custom_call.1} parent=27 // pred_fallthru
          _
        %s186 = sand.u32 %s72, 1
        %s187 = scalar_lea.sflag [#allocation6], %s186
        %s188 = sand.u32 %s72, 1
        %s189 = smul.addr %s188, 16
        %s190 = scalar_lea.vmem [#allocation5], %s189
        // Predicated region
        $region33: #{tpu_custom_call.1} parent=27 // pred_check
          %p191 = pneg %p85
        $region34: #{tpu_custom_call.1} parent=27 // pred_check_branch
          %193 = sbr.rel (%p191) target = $region36
        $region35: #{tpu_custom_call.1} parent=27 // pred_region
          %194 = dma.done %s187, 256
        $region36: #{tpu_custom_call.1} parent=27 // pred_fallthru
          _
        %s195 = sand.u32 %s44, 1
        %s196 = scalar_lea.sflag [#allocation3], %s195
        %s197 = sand.u32 %s44, 1
        %s198 = smul.addr %s197, 16
        %s199 = scalar_lea.vmem [#allocation2], %s198
        %p200 = pneg %p57
        %p201 = pneg %p54
        %s202 = sand.u32 %s72, 1
        %s203 = scalar_lea.sflag [#allocation6], %s202
        %s204 = sand.u32 %s72, 1
        %s205 = smul.addr %s204, 16
        %s206 = scalar_lea.vmem [#allocation5], %s205
        %p207 = pneg %p85
        %p208 = pneg %p82
        %p209 = pneg %p111
        %p210 = pneg %p108
        %s211 = sand.u32 %s98, 1
        %s212 = scalar_lea.sflag [#allocation4], %s211
        %s213 = sand.u32 %s98, 1
        %s214 = smul.addr %s213, 16
        %s215 = scalar_lea.vmem [#allocation7], %s214
        %s216 = sadd.s32 %s26, %s27
        %s217 = sadd.s32 %s26, %s27
        %p218 = scmp.eq.s32.totalorder %s27, 0
        // Predicated region
        $region37: #{tpu_custom_call.1} parent=27 // pred_check
          %p219 = pneg %p218
        $region38: #{tpu_custom_call.1} parent=27 // pred_check_branch
          %221 = sbr.rel (%p219) target = $region40
        $region39: #{tpu_custom_call.1} parent=27 // pred_region
          %222 = vst [vmem:[%s215] sm:$0xff] 0.0
          %223 = vst [vmem:[%s215 + $0x8] sm:$0xff] 0.0
        $region40: #{tpu_custom_call.1} parent=27 // pred_fallthru
          _
        %v224 = vld [vmem:[%s181] sm:$0xff]
        %v225 = vld [vmem:[%s181 + $0x8] sm:$0xff]
        %v226 = vld [vmem:[%s190] sm:$0xff]
        %v227 = vld [vmem:[%s190 + $0x8] sm:$0xff]
        %v228 = vmax.f32 %v224, %v225
        %229 = vmax.xlane.f32.xlu0 %v228
        %v230 = vpop.xlane.xlu0 %229
        %v231 = vsub.f32 %v224, %v230
        %v232 = vsub.f32 %v225, %v230
        %v233 = vmul.f32 %v231, 1.442695
        %v234 = vpow.pop %v233
        %v235 = vmul.f32 %v232, 1.442695
        %v236 = vpow.pop %v235
        %v237 = vadd.f32 %v234, %v236
        %238 = vadd.xlane.f32.xlu0 %v237
        %v239 = vpop.xlane.xlu0 %238
        %v240 = vlog2.pop %v239
        %v241 = vmul.f32 %v240, 0.6931472
        %v242 = vadd.f32 %v241, %v230
        %v243 = vsub.f32 %v242, %v224
        %v244 = vsub.f32 %v242, %v225
        %v245 = vmul.f32 %v226, %v243
        %v246 = vmul.f32 %v227, %v244
        %v247 = vadd.f32 %v245, 0.0
        %v248 = vadd.f32 %v246, 0.0
        %v249 = vld [vmem:[%s215] sm:$0xff]
        %v250 = vld [vmem:[%s215 + $0x8] sm:$0xff]
        %v251 = vadd.f32 %v249, %v247
        %v252 = vadd.f32 %v250, %v248
        %253 = vst [vmem:[%s215] sm:$0xff] %v251
        %254 = vst [vmem:[%s215 + $0x8] sm:$0xff] %v252
        %s255 = sand.u32 %s98, 1
        %s256 = scalar_lea.sflag [#allocation4], %s255
        %s257 = sand.u32 %s98, 1
        %s258 = smul.addr %s257, 16
        %s259 = scalar_lea.vmem [#allocation7], %s258
        // Predicated region
        $region41: #{tpu_custom_call.1} parent=27 // pred_check
          %p260 = pneg %p108
        $region42: #{tpu_custom_call.1} parent=27 // pred_check_branch
          %262 = sbr.rel (%p260) target = $region44
        $region43: #{tpu_custom_call.1} parent=27 // pred_region
          %s264 = ssub.s32 256, 256
          %265 = vsyncadd %s256, %s264
          %s266 = smul.addr %s26, 2
          %s267 = smul.addr %s266, 128
          %s268 = scalar_lea.hbm %s2, %s267
          %s270 = sshll.u32 %s259, 4
          %s271 = int_to_ptr.vmem [resolvable:$true] %s270
          %273 = dma.vmem_to_hbm [thread:$0]  %s271, 256, %s268, %s256
        $region44: #{tpu_custom_call.1} parent=27 // pred_fallthru
          _
      $region28: #{tpu_custom_call.1} parent=5 // pred_fallthru
        _
      %p274 = scmp.le.s32.totalorder 2, %s17
      // Predicated region
      $region45: #{tpu_custom_call.1} parent=5 // pred_check
        %p275 = pneg %p274
      $region46: #{tpu_custom_call.1} parent=5 // pred_check_branch
        %277 = sbr.rel (%p275) target = $region48
      $region47: #{tpu_custom_call.1} parent=5 // pred_region
        %s278 = ssub.s32 %s17, 2
        // Predicated region
        $region49: #{tpu_custom_call.1} parent=47 // pred_check
          %p279 = pneg %p114
        $region50: #{tpu_custom_call.1} parent=47 // pred_check_branch
          %281 = sbr.rel (%p279) target = $region52
        $region51: #{tpu_custom_call.1} parent=47 // pred_region
          %s282 = sand.u32 %s99, 1
          %s283 = scalar_lea.sflag [#allocation4], %s282
          %s284 = sand.u32 %s99, 1
          %s285 = smul.addr %s284, 16
          %s286 = scalar_lea.vmem [#allocation7], %s285
          %287 = dma.done %s283, 256
        $region52: #{tpu_custom_call.1} parent=47 // pred_fallthru
          _
      $region48: #{tpu_custom_call.1} parent=5 // pred_fallthru
        _
    $region6: #{tpu_custom_call.1} parent=1 // loop_footer
      %s21 = sadd.s32 1, %s17
    $region7: #{tpu_custom_call.1} parent=1 // loop_footer_branch
      %16 = sbr.rel target = $region3
    $region8: #{tpu_custom_call.1} parent=1 // loop_exit
      _
    %288 = vsyncpa [#allocation3], 1
    %s289 = scalar_lea.sflag [#allocation3], 1
    %290 = vsyncpa %s289, 1
    %291 = vsyncpa [#allocation6], 1
    %s292 = scalar_lea.sflag [#allocation6], 1
    %293 = vsyncpa %s292, 1
    %294 = vsyncpa [#allocation4], 1
    %s295 = scalar_lea.sflag [#allocation4], 1
    %296 = vsyncpa %s295, 1

</llo_original>
